<compile_context>
chip_gen: v7x
topology: tpu7x:2x2x1
jax: 0.10.0
libtpu: 0.0.40
codegen_flags: <defaults>
</compile_context>

<pallas_src>
import functools

import jax
import jax.numpy as jnp
from jax.experimental import pallas as pl
from jax.experimental.pallas import tpu as pltpu


# ----------------------------------------------------------------------------
# Interpolation weight matrices (glue, plain JAX)
# ----------------------------------------------------------------------------
def _bilinear_matrix(n_out: int, n_in: int) -> jnp.ndarray:
    """Bilinear resize matrix (n_out, n_in), align_corners=False."""
    dst = jnp.arange(n_out, dtype=jnp.float32)
    src = (dst + 0.5) * (n_in / n_out) - 0.5
    src = jnp.clip(src, 0.0, n_in - 1.0)
    i0 = jnp.floor(src)
    frac = src - i0
    i0 = i0.astype(jnp.int32)
    i1 = jnp.clip(i0 + 1, 0, n_in - 1)
    oh0 = jax.nn.one_hot(i0, n_in, dtype=jnp.float32)
    oh1 = jax.nn.one_hot(i1, n_in, dtype=jnp.float32)
    return oh0 * (1.0 - frac)[:, None] + oh1 * frac[:, None]


def _cubic_weight(t: jnp.ndarray, a: float = -0.75) -> jnp.ndarray:
    t = jnp.abs(t)
    w1 = ((a + 2.0) * t - (a + 3.0)) * t * t + 1.0          # |t| <= 1
    w2 = a * (((t - 5.0) * t + 8.0) * t - 4.0)              # 1 < |t| < 2
    return jnp.where(t <= 1.0, w1, jnp.where(t < 2.0, w2, 0.0))


def _bicubic_matrix_from_src(src: jnp.ndarray, n_in: int) -> jnp.ndarray:
    """Bicubic (a=-0.75) interpolation matrix via scatter-add (no big one-hot).

    src: (B, n_out) source coordinates  ->  returns (B, n_out, n_in).
    Border taps are clamped to the valid range.
    """
    i0 = jnp.floor(src)
    taps = i0[..., None] + jnp.arange(-1, 3, dtype=jnp.float32)        # (B, n_out, 4)
    w = _cubic_weight(src[..., None] - taps)                           # (B, n_out, 4)
    idx = jnp.clip(taps, 0.0, n_in - 1.0).astype(jnp.int32)            # (B, n_out, 4)
    b, n_out = src.shape
    bi = jnp.broadcast_to(jnp.arange(b, dtype=jnp.int32)[:, None, None], idx.shape)
    oi = jnp.broadcast_to(jnp.arange(n_out, dtype=jnp.int32)[None, :, None], idx.shape)
    mat = jnp.zeros((b, n_out, n_in), dtype=jnp.float32)
    return mat.at[bi, oi, idx].add(w)


def _crop_src_coords(start: jnp.ndarray, extent: jnp.ndarray, n_out: int) -> jnp.ndarray:
    """align_corners=True mapping of output grid onto crop box [start, start+extent-1]."""
    grid = jnp.arange(n_out, dtype=jnp.float32)
    denom = max(n_out - 1, 1)
    return start[:, None] + grid[None, :] * (extent[:, None] - 1.0) / denom


def _sample_crop_boxes(key, batch, h, w, scale=(0.6, 1.0), ratio=(3.0 / 4.0, 4.0 / 3.0)):
    """Per-sample RandomResizedCrop boxes: returns y0, x0, crop_h, crop_w (floats)."""
    k1, k2, k3, k4 = jax.random.split(key, 4)
    area = (h * w) * jax.random.uniform(k1, (batch,), minval=scale[0], maxval=scale[1])
    log_r = jax.random.uniform(k2, (batch,), minval=jnp.log(ratio[0]), maxval=jnp.log(ratio[1]))
    r = jnp.exp(log_r)
    cw = jnp.clip(jnp.sqrt(area * r), 1.0, float(w))
    ch = jnp.clip(jnp.sqrt(area / r), 1.0, float(h))
    x0 = jax.random.uniform(k3, (batch,)) * (w - cw)
    y0 = jax.random.uniform(k4, (batch,)) * (h - ch)
    return y0, x0, ch, cw


# ----------------------------------------------------------------------------
# VMEM capacity / batch-tile selection
# ----------------------------------------------------------------------------
@functools.lru_cache(maxsize=1)
def _vmem_capacity_bytes() -> int:
    try:
        return int(pltpu.get_tpu_info().vmem_capacity_bytes)
    except Exception:
        return 64 << 20   # conservative (v7x-sized) fallback


def _pick_batch_tile(b: int, per_sample_bytes: int, budget_bytes: int, cap: int = 8) -> int:
    """Largest batch tile <= cap that divides b (no padding) and fits the budget."""
    bt_max = max(1, min(b, cap, budget_bytes // max(2 * per_sample_bytes, 1)))
    for bt in range(int(bt_max), 0, -1):
        if b % bt == 0:
            return bt
    return 1


# ----------------------------------------------------------------------------
# Pallas kernel: composed separable resample, Bt batch elements per grid step
# ----------------------------------------------------------------------------
def _resample_kernel(x_ref, rbd_ref, ct_ref, o_ref, *, bt):
    # x_ref  : (Bt, C*H0, W0)   original image dtype (cast to bf16 on-chip)
    # rbd_ref: (Bt, C*Hc, C*H0) bf16 block-diagonal composed row matrices
    # ct_ref : (Bt, W0, Wc)     bf16 composed column matrices (pre-transposed)
    # o_ref  : (1, C*Hc, Bt*Wc) output dtype, batch tile packed along lanes
    outs = []
    for t in range(bt):
        xb = x_ref[t].astype(jnp.bfloat16)                               # VPU cast in-kernel
        # Pass 1 (columns): all channels at once, one wide MXU matmul.
        s = jnp.dot(xb, ct_ref[t], preferred_element_type=jnp.float32)   # (C*H0, Wc)
        # Pass 2 (rows): one block-diagonal MXU matmul covering all channels.
        y = jnp.dot(rbd_ref[t], s.astype(jnp.bfloat16),
                    preferred_element_type=jnp.float32)                  # (C*Hc, Wc)
        outs.append(y)
    # Single dense (lane-packed) store for the whole batch tile.
    o_ref[0] = jnp.concatenate(outs, axis=-1).astype(o_ref.dtype)


def _resample_pallas(x2d, r_bd, ct, *, bt, out_dtype):
    """x2d: (B, C*H0, W0) input dtype; r_bd: (B, C*Hc, C*H0) bf16; ct: (B, W0, Wc) bf16."""
    b, ch0, w0 = x2d.shape
    chc = r_bd.shape[1]
    wc = ct.shape[2]
    nb = b // bt

    x_item = jnp.dtype(x2d.dtype).itemsize
    o_item = jnp.dtype(out_dtype).itemsize

    # Per-step footprint: inputs + output (double buffered) + f32/bf16 intermediates.
    in_block = bt * (ch0 * w0 * x_item + chc * ch0 * 2 + w0 * wc * 2)
    out_block = chc * bt * wc * o_item
    interm = bt * (ch0 * wc * 6 + chc * wc * 4)
    vmem_limit = int(min(max(2 * (in_block + out_block) + interm + (4 << 20), 16 << 20),
                         (3 * _vmem_capacity_bytes()) // 4))
    # TODO(synk): very large single samples (e.g. 12x1024x1024) would additionally need an
    #             intra-sample channel/W0 split to fit v7x's 64 MiB VMEM; not needed here.

    flops = 2 * b * (ch0 * w0 * wc + chc * ch0 * wc)
    bytes_accessed = nb * (in_block + out_block)

    kernel = functools.partial(_resample_kernel, bt=bt)

    return pl.pallas_call(
        kernel,
        out_shape=jax.ShapeDtypeStruct((nb, chc, bt * wc), out_dtype),
        grid=(nb,),
        in_specs=[
            pl.BlockSpec((bt, ch0, w0), lambda i: (i, 0, 0)),
            pl.BlockSpec((bt, chc, ch0), lambda i: (i, 0, 0)),
            pl.BlockSpec((bt, w0, wc), lambda i: (i, 0, 0)),
        ],
        out_specs=pl.BlockSpec((1, chc, bt * wc), lambda i: (i, 0, 0)),
        compiler_params=pltpu.CompilerParams(
            dimension_semantics=("parallel",),
            vmem_limit_bytes=vmem_limit,
        ),
        cost_estimate=pl.CostEstimate(
            flops=flops, transcendentals=0, bytes_accessed=bytes_accessed),
    )(x2d, r_bd, ct)


# ----------------------------------------------------------------------------
# Module-equivalent wrapper
# ----------------------------------------------------------------------------
class AugmentationsPallas:
    def __init__(self, image_size=(16, 16), crop_size=None, patch_size=16,
                 embed_dim=512, scale=(0.6, 1.0)):
        if isinstance(image_size, int):
            image_size = (image_size, image_size)
        crop_size = crop_size or image_size
        if isinstance(crop_size, int):
            crop_size = (crop_size, crop_size)
        if isinstance(scale, float):
            scale = (scale, scale)
        self.image_size = image_size
        self.crop_size = crop_size
        self.patch_size = patch_size
        self.embed_patch_size = (
            min(int(embed_dim ** 0.5), patch_size) if embed_dim is not None else patch_size
        )
        self.scale = scale

    def __call__(self, x, stage=None, key=None):
        b, c, h0, w0 = x.shape
        h1, w1 = self.image_size
        hc, wc = self.crop_size

        # Stage 1: K.Resize(image_size, bilinear, align_corners=False)
        rh1 = _bilinear_matrix(h1, h0)                     # (H1, H0)
        cw1 = _bilinear_matrix(w1, w0)                     # (W1, W0)

        # Stage 2: per-sample crop box, then bicubic crop-resize to crop_size
        if stage is None or stage == "train":
            if key is None:
                key = jax.random.PRNGKey(0)
            y0, x0, ch_box, cw_box = _sample_crop_boxes(key, b, h1, w1, self.scale)
        else:  # 'val' -> center crop (integer start, matching kornia CenterCrop)
            y0 = jnp.full((b,), float((h1 - hc) // 2), dtype=jnp.float32)
            x0 = jnp.full((b,), float((w1 - wc) // 2), dtype=jnp.float32)
            ch_box = jnp.full((b,), float(hc), dtype=jnp.float32)
            cw_box = jnp.full((b,), float(wc), dtype=jnp.float32)

        src_y = _crop_src_coords(y0, ch_box, hc)           # (B, Hc)
        src_x = _crop_src_coords(x0, cw_box, wc)           # (B, Wc)
        rh2 = _bicubic_matrix_from_src(src_y, h1)          # (B, Hc, H1)
        cw2 = _bicubic_matrix_from_src(src_x, w1)          # (B, Wc, W1)

        # Compose resize∘crop into ONE row matrix and ONE (pre-transposed) column
        # matrix per sample (f32 accumulation, then bf16 for the MXU).
        r = jnp.einsum('bij,jk->bik', rh2, rh1).astype(jnp.bfloat16)    # (B, Hc, H0)
        ct = jnp.einsum('bij,jk->bki', cw2, cw1).astype(jnp.bfloat16)   # (B, W0, Wc)

        # Block-diagonalize R over channels so pass 2 is one MXU matmul per sample.
        # (C*Hc, C*H0) stays well under one MXU tile at these sizes, so the zeros
        # are free and no per-channel slicing happens inside the kernel.
        eye_c = jnp.eye(c, dtype=jnp.bfloat16)
        r_bd = (r[:, None, :, None, :] * eye_c[None, :, None, :, None]).reshape(
            b, c * hc, c * h0)                                          # (B, C*Hc, C*H0)

        # Fold channels into sublanes (free reshape).  The image keeps its original
        # dtype; the bf16 cast happens inside the kernel (saves one HBM round-trip).
        x2d = x.reshape(b, c * h0, w0)

        # Batch tile: amortize per-grid-step overhead while staying inside VMEM.
        x_item = jnp.dtype(x.dtype).itemsize
        per_sample = (c * h0 * w0 * x_item
                      + (c * hc) * (c * h0) * 2
                      + w0 * wc * 2
                      + c * hc * wc * x_item
                      + c * h0 * wc * 6 + c * hc * wc * 4)
        budget = min(8 << 20, _vmem_capacity_bytes() // 8)
        bt = _pick_batch_tile(b, per_sample, budget)

        out = _resample_pallas(x2d, r_bd, ct, bt=bt, out_dtype=x.dtype)

        # Undo the lane packing of the batch tile (cheap XLA reshape/transpose on the
        # small output), back to NCHW.
        nb = b // bt
        out = out.reshape(nb, c, hc, bt, wc).transpose(0, 3, 1, 2, 4)
        return out.reshape(b, c, hc, wc)


if __name__ == "__main__":
    key = jax.random.PRNGKey(0)
    kx, kcrop = jax.random.split(key)

    B, C, H, W = 2, 4, 20, 20
    x = jax.random.normal(kx, (B, C, H, W), dtype=jnp.float32)

    aug = AugmentationsPallas(image_size=(16, 16), crop_size=None,
                              patch_size=16, embed_dim=512, scale=(0.6, 1.0))

    out_train = aug(x, stage=None, key=kcrop)   # Resize + RandomResizedCrop (bicubic)
    out_val = aug(x, stage="val")               # Resize + CenterCrop (bicubic)

    out_train = jax.block_until_ready(out_train)
    out_val = jax.block_until_ready(out_val)

    assert out_train.shape == (B, C, 16, 16)
    assert out_val.shape == (B, C, 16, 16)
    assert bool(jnp.all(jnp.isfinite(out_train)))
    assert bool(jnp.all(jnp.isfinite(out_val)))

    print("KERNEL_OK")
</pallas_src>

<mosaic_0001>
module attributes {stable_mosaic.version = 11 : i64} {
  func.func @_resample_kernel(%arg0: i32, %arg1: memref<2x80x20xf32, #tpu.memory_space<vmem>>, %arg2: memref<2x64x80xbf16, #tpu.memory_space<vmem>>, %arg3: memref<2x20x16xbf16, #tpu.memory_space<vmem>>, %arg4: memref<1x64x32xf32, #tpu.memory_space<vmem>>) attributes {dimension_semantics = [#tpu.dimension_semantics<parallel>], iteration_bounds = array<i64: 1>, scalar_prefetch = 0 : i64, scratch_operands = 0 : i64, tpu.core_type = #tpu.core_type<tc>, window_params = [{transform_indices = @transform_0, window_bounds = array<i64: 2, 80, 20>}, {transform_indices = @transform_1, window_bounds = array<i64: 2, 64, 80>}, {transform_indices = @transform_2, window_bounds = array<i64: 2, 20, 16>}, {transform_indices = @transform_3, window_bounds = array<i64: 1, 64, 32>}]} {
    %c0 = arith.constant 0 : index
    %c0_0 = arith.constant 0 : index
    %c0_1 = arith.constant 0 : index
    %0 = vector.load %arg1[%c0, %c0_0, %c0_1] : memref<2x80x20xf32, #tpu.memory_space<vmem>>, vector<1x80x20xf32>
    %1 = vector.shape_cast %0 : vector<1x80x20xf32> to vector<80x20xf32>
    %2 = arith.truncf %1 : vector<80x20xf32> to vector<80x20xbf16>
    %c0_2 = arith.constant 0 : index
    %c0_3 = arith.constant 0 : index
    %c0_4 = arith.constant 0 : index
    %3 = vector.load %arg3[%c0_2, %c0_3, %c0_4] : memref<2x20x16xbf16, #tpu.memory_space<vmem>>, vector<1x20x16xbf16>
    %4 = vector.shape_cast %3 : vector<1x20x16xbf16> to vector<20x16xbf16>
    %cst = arith.constant dense<0.000000e+00> : vector<80x16xf32>
    %5 = tpu.matmul %2, %4, %cst {dimension_numbers = #tpu.dot_dimension_numbers<[1], [0], [0], [1], [0, 0, 1, 1], [], []>} : vector<80x20xbf16>, vector<20x16xbf16>, vector<80x16xf32> -> vector<80x16xf32>
    %c0_5 = arith.constant 0 : index
    %c0_6 = arith.constant 0 : index
    %c0_7 = arith.constant 0 : index
    %6 = vector.load %arg2[%c0_5, %c0_6, %c0_7] : memref<2x64x80xbf16, #tpu.memory_space<vmem>>, vector<1x64x80xbf16>
    %7 = vector.shape_cast %6 : vector<1x64x80xbf16> to vector<64x80xbf16>
    %8 = arith.truncf %5 : vector<80x16xf32> to vector<80x16xbf16>
    %cst_8 = arith.constant dense<0.000000e+00> : vector<64x16xf32>
    %9 = tpu.matmul %7, %8, %cst_8 {dimension_numbers = #tpu.dot_dimension_numbers<[1], [0], [0], [1], [0, 0, 1, 1], [], []>} : vector<64x80xbf16>, vector<80x16xbf16>, vector<64x16xf32> -> vector<64x16xf32>
    %c1 = arith.constant 1 : index
    %c0_9 = arith.constant 0 : index
    %c0_10 = arith.constant 0 : index
    %10 = vector.load %arg1[%c1, %c0_9, %c0_10] : memref<2x80x20xf32, #tpu.memory_space<vmem>>, vector<1x80x20xf32>
    %11 = vector.shape_cast %10 : vector<1x80x20xf32> to vector<80x20xf32>
    %12 = arith.truncf %11 : vector<80x20xf32> to vector<80x20xbf16>
    %c1_11 = arith.constant 1 : index
    %c0_12 = arith.constant 0 : index
    %c0_13 = arith.constant 0 : index
    %13 = vector.load %arg3[%c1_11, %c0_12, %c0_13] : memref<2x20x16xbf16, #tpu.memory_space<vmem>>, vector<1x20x16xbf16>
    %14 = vector.shape_cast %13 : vector<1x20x16xbf16> to vector<20x16xbf16>
    %cst_14 = arith.constant dense<0.000000e+00> : vector<80x16xf32>
    %15 = tpu.matmul %12, %14, %cst_14 {dimension_numbers = #tpu.dot_dimension_numbers<[1], [0], [0], [1], [0, 0, 1, 1], [], []>} : vector<80x20xbf16>, vector<20x16xbf16>, vector<80x16xf32> -> vector<80x16xf32>
    %c1_15 = arith.constant 1 : index
    %c0_16 = arith.constant 0 : index
    %c0_17 = arith.constant 0 : index
    %16 = vector.load %arg2[%c1_15, %c0_16, %c0_17] : memref<2x64x80xbf16, #tpu.memory_space<vmem>>, vector<1x64x80xbf16>
    %17 = vector.shape_cast %16 : vector<1x64x80xbf16> to vector<64x80xbf16>
    %18 = arith.truncf %15 : vector<80x16xf32> to vector<80x16xbf16>
    %cst_18 = arith.constant dense<0.000000e+00> : vector<64x16xf32>
    %19 = tpu.matmul %17, %18, %cst_18 {dimension_numbers = #tpu.dot_dimension_numbers<[1], [0], [0], [1], [0, 0, 1, 1], [], []>} : vector<64x80xbf16>, vector<80x16xbf16>, vector<64x16xf32> -> vector<64x16xf32>
    %20 = tpu.concatenate %9, %19 in 1 : vector<64x16xf32>, vector<64x16xf32> -> vector<64x32xf32>
    %c0_19 = arith.constant 0 : index
    %c0_20 = arith.constant 0 : index
    %c0_21 = arith.constant 0 : index
    %21 = vector.load %arg4[%c0_19, %c0_20, %c0_21] : memref<1x64x32xf32, #tpu.memory_space<vmem>>, vector<1x64x32xf32>
    %22 = vector.shape_cast %21 : vector<1x64x32xf32> to vector<64x32xf32>
    %23 = vector.shape_cast %20 : vector<64x32xf32> to vector<1x64x32xf32>
    tpu.vector_store %arg4[%c0_19, %c0_20, %c0_21], %23 {strides = array<i32>} : memref<1x64x32xf32, #tpu.memory_space<vmem>>, vector<1x64x32xf32>,
    return
  }
  func.func @transform_0(%arg0: i32) -> (i32, i32, i32) {
    %c0_i32 = arith.constant 0 : i32
    %c0_i32_0 = arith.constant 0 : i32
    %c0_i32_1 = arith.constant 0 : i32
    return %arg0, %c0_i32, %c0_i32_0 : i32, i32, i32
  }
  func.func @transform_1(%arg0: i32) -> (i32, i32, i32) {
    %c0_i32 = arith.constant 0 : i32
    %c0_i32_0 = arith.constant 0 : i32
    %c0_i32_1 = arith.constant 0 : i32
    return %arg0, %c0_i32, %c0_i32_0 : i32, i32, i32
  }
  func.func @transform_2(%arg0: i32) -> (i32, i32, i32) {
    %c0_i32 = arith.constant 0 : i32
    %c0_i32_0 = arith.constant 0 : i32
    %c0_i32_1 = arith.constant 0 : i32
    return %arg0, %c0_i32, %c0_i32_0 : i32, i32, i32
  }
  func.func @transform_3(%arg0: i32) -> (i32, i32, i32) {
    %c0_i32 = arith.constant 0 : i32
    %c0_i32_0 = arith.constant 0 : i32
    %c0_i32_1 = arith.constant 0 : i32
    return %arg0, %c0_i32, %c0_i32_0 : i32, i32, i32
  }
}

</mosaic_0001>

<llo_original>
// kernel: tpu_custom_call.1
$region0: #{tpu_custom_call.1}
  #allocation0 [shape = 'u32[]', space=smem, size = 0x4, offset = 0x4, fixed_abs, tag = 'smem constant byte address 0x4 - core index']
  #allocation1 [shape = 'u32[144,128]{1,0:T(1,128)}', space=vmem, size = 0x12000, scoped, tag = 'internal scratch']
  %s0 = inlined_call_operand.vmem [shape: f32[2,80,20], index: 0, kind: input, shape index: {}]
  %s1 = inlined_call_operand.vmem [shape: bf16[2,64,80], index: 1, kind: input, shape index: {}]
  %s2 = inlined_call_operand.vmem [shape: bf16[2,20,16], index: 2, kind: input, shape index: {}]
  %s3 = inlined_call_operand.vmem [shape: f32[1,64,32], index: 3, kind: output, shape index: {}]
  %s4 = sld [smem:[#allocation0]]
  $region22: #{tpu_custom_call.1} parent=0
    _
  %s6 = ssub.s32 1, %s4
  %s7 = scalar_select 0, %s6, %s4
  // Predicated region
  $region2: #{tpu_custom_call.1} parent=0 // pred_check
    _
  $region3: #{tpu_custom_call.1} parent=0 // pred_check_branch
    %9 = sbr.rel (0) target = $region5
  $region4: #{tpu_custom_call.1} parent=0 // pred_region
    _
  $region5: #{tpu_custom_call.1} parent=0 // pred_fallthru
    _
  // Predicated region
  $region6: #{tpu_custom_call.1} parent=0 // pred_check
    _
  $region7: #{tpu_custom_call.1} parent=0 // pred_check_branch
    %11 = sbr.rel (0) target = $region9
  $region8: #{tpu_custom_call.1} parent=0 // pred_region
    _
  $region9: #{tpu_custom_call.1} parent=0 // pred_fallthru
    _
  // Predicated region
  $region10: #{tpu_custom_call.1} parent=0 // pred_check
    _
  $region11: #{tpu_custom_call.1} parent=0 // pred_check_branch
    %13 = sbr.rel (0) target = $region13
  $region12: #{tpu_custom_call.1} parent=0 // pred_region
    _
  $region13: #{tpu_custom_call.1} parent=0 // pred_fallthru
    _
  %v15 = vld [vmem:[%s0] sm:$0xff]
  %v16 = vld [vmem:[%s0 + $0x8] sm:$0xff]
  %v17 = vld [vmem:[%s0 + $0x10] sm:$0xff]
  %v18 = vld [vmem:[%s0 + $0x18] sm:$0xff]
  %v19 = vld [vmem:[%s0 + $0x20] sm:$0xff]
  %v20 = vld [vmem:[%s0 + $0x28] sm:$0xff]
  %v21 = vld [vmem:[%s0 + $0x30] sm:$0xff]
  %v22 = vld [vmem:[%s0 + $0x38] sm:$0xff]
  %v23 = vld [vmem:[%s0 + $0x40] sm:$0xff]
  %v24 = vld [vmem:[%s0 + $0x48] sm:$0xff]
  %v25 = vpack.c.bf16 %v16, %v15
  %v26 = vpack.c.bf16 %v18, %v17
  %v27 = vpack.c.bf16 %v20, %v19
  %v28 = vpack.c.bf16 %v22, %v21
  %v29 = vpack.c.bf16 %v24, %v23
  %v30 = vld [vmem:[%s2] sm:$0xf]
  %v31 = vld [vmem:[%s2 + $0x4] sm:$0xf]
  %v32 = vld [vmem:[%s2 + $0x8] sm:$0x3]
  %v36 = vunpack.c.l.b16 %v30
  %v37 = vunpack.c.l.b16 %v31
  %v38 = vunpack.c.l.b16 %v32
  %v39 = vpack.c.b16 %v37, %v36
  %v40 = vpack.c.b16 %v38, %v38
  %vm42 = vcmask 162816
  %v44 = vsel %vm42, %v25, 0
  %v47 = vsel %vm42, %v26, 0
  %v50 = vsel %vm42, %v27, 0
  %v53 = vsel %vm42, %v28, 0
  %v56 = vsel %vm42, %v29, 0
  %vm58 = vcmask 1041408
  %v60 = vsel %vm58, %v40, 0
  %62 = vmatprep.subr.bf16.mxu0 0
  %63 = vmatpush1.bf16.msra.mxu0 %v39
  %64 = vmatprep.subr.bf16.mxu0 0
  %65 = vmatpush1.bf16.msra.mxu0 %v60
  %66 = vmatprep.subr.bf16.mxu0 0
  %67 = vmatpush1.bf16.msra.mxu0 0
  %68 = vmatprep.subr.bf16.mxu0 0
  %69 = vmatpush1.bf16.msra.mxu0 0
  %70 = vmatprep.subr.bf16.mxu0 0
  %71 = vmatpush1.bf16.msra.mxu0 0
  %72 = vmatprep.subr.bf16.mxu0 0
  %73 = vmatpush1.bf16.msra.mxu0 0
  %74 = vmatprep.subr.bf16.mxu0 0
  %75 = vmatpush1.bf16.msra.mxu0 0
  %76 = vmatprep.subr.bf16.mxu0 0
  %77 = vmatpush1.bf16.msra.mxu0 0
  %78 = vmatprep.subr.bf16.mxu0 0
  %79 = vmatpush1.bf16.msra.mxu0 0
  %80 = vmatprep.subr.bf16.mxu0 0
  %81 = vmatpush1.bf16.msra.mxu0 0
  %82 = vmatprep.subr.bf16.mxu0 0
  %83 = vmatpush1.bf16.msra.mxu0 0
  %84 = vmatprep.subr.bf16.mxu0 0
  %85 = vmatpush1.bf16.msra.mxu0 0
  %86 = vmatprep.subr.bf16.mxu0 0
  %87 = vmatpush1.bf16.msra.mxu0 0
  %88 = vmatprep.subr.bf16.mxu0 0
  %89 = vmatpush1.bf16.msra.mxu0 0
  %90 = vmatprep.subr.bf16.mxu0 0
  %91 = vmatpush1.bf16.msra.mxu0 0
  %92 = vmatprep.subr.bf16.mxu0 0
  %93 = vmatpush1.bf16.msra.mxu0 0
  %94 = vmatprep.mubr.bf16.mxu0 0
  %95 = vmatmul.mubr.bf16.gmra.mrb[0].mxu0 %v44
  %v96 = vpop.f32.mrb[0].mxu0
  %v97 = vadd.f32 0.0, %v96
  %v98 = vpop.f32.mrb[0].mxu0
  %v99 = vpop.f32.mrb[0].mxu0
  %v100 = vadd.f32 0.0, %v99
  %v101 = vpop.f32.mrb[0].mxu0
  %102 = vmatprep.mubr.bf16.mxu0 0
  %103 = vmatmul.mubr.bf16.gmra.mrb[0].mxu0 %v47
  %v104 = vpop.f32.mrb[0].mxu0
  %v105 = vadd.f32 0.0, %v104
  %v106 = vpop.f32.mrb[0].mxu0
  %v107 = vpop.f32.mrb[0].mxu0
  %v108 = vadd.f32 0.0, %v107
  %v109 = vpop.f32.mrb[0].mxu0
  %110 = vmatprep.mubr.bf16.mxu0 0
  %111 = vmatmul.mubr.bf16.gmra.mrb[0].mxu0 %v50
  %v112 = vpop.f32.mrb[0].mxu0
  %v113 = vadd.f32 0.0, %v112
  %v114 = vpop.f32.mrb[0].mxu0
  %v115 = vpop.f32.mrb[0].mxu0
  %v116 = vadd.f32 0.0, %v115
  %v117 = vpop.f32.mrb[0].mxu0
  %118 = vmatprep.mubr.bf16.mxu0 0
  %119 = vmatmul.mubr.bf16.gmra.mrb[0].mxu0 %v53
  %v120 = vpop.f32.mrb[0].mxu0
  %v121 = vadd.f32 0.0, %v120
  %v122 = vpop.f32.mrb[0].mxu0
  %v123 = vpop.f32.mrb[0].mxu0
  %v124 = vadd.f32 0.0, %v123
  %v125 = vpop.f32.mrb[0].mxu0
  %126 = vmatprep.mubr.bf16.mxu0 0
  %127 = vmatmul.mubr.bf16.gmra.mrb[0].mxu0 %v56
  %v128 = vpop.f32.mrb[0].mxu0
  %v129 = vadd.f32 0.0, %v128
  %v130 = vpop.f32.mrb[0].mxu0
  %v131 = vpop.f32.mrb[0].mxu0
  %v132 = vadd.f32 0.0, %v131
  %v133 = vpop.f32.mrb[0].mxu0
  %134 = vdwg.mxu0
  %v135 = vld [vmem:[%s1] sm:$0xf]
  %v136 = vld [vmem:[%s1 + $0x4] sm:$0xf]
  %v137 = vld [vmem:[%s1 + $0x8] sm:$0xf]
  %v138 = vld [vmem:[%s1 + $0xc] sm:$0xf]
  %v139 = vld [vmem:[%s1 + $0x10] sm:$0xf]
  %v140 = vld [vmem:[%s1 + $0x14] sm:$0xf]
  %v141 = vld [vmem:[%s1 + $0x18] sm:$0xf]
  %v142 = vld [vmem:[%s1 + $0x1c] sm:$0xf]
  %v143 = vpack.c.bf16 %v100, %v97
  %v144 = vpack.c.bf16 %v108, %v105
  %v145 = vpack.c.bf16 %v116, %v113
  %v146 = vpack.c.bf16 %v124, %v121
  %v147 = vpack.c.bf16 %v132, %v129
  %v156 = vunpack.c.l.b16 %v135
  %v157 = vunpack.c.l.b16 %v136
  %v158 = vunpack.c.l.b16 %v137
  %v159 = vunpack.c.l.b16 %v138
  %v160 = vunpack.c.l.b16 %v139
  %v161 = vunpack.c.l.b16 %v140
  %v162 = vunpack.c.l.b16 %v141
  %v163 = vunpack.c.l.b16 %v142
  %v164 = vpack.c.b16 %v157, %v156
  %v165 = vpack.c.b16 %v159, %v158
  %v166 = vpack.c.b16 %v161, %v160
  %v167 = vpack.c.b16 %v163, %v162
  %vm168 = vcmask 654336
  %v170 = vsel %vm168, %v164, 0
  %v173 = vsel %vm168, %v165, 0
  %v176 = vsel %vm168, %v166, 0
  %v179 = vsel %vm168, %v167, 0
  %181 = vmatprep.subr.bf16.mxu0 0
  %182 = vmatpush1.bf16.msra.mxu0 %v143
  %183 = vmatprep.subr.bf16.mxu0 0
  %184 = vmatpush1.bf16.msra.mxu0 %v144
  %185 = vmatprep.subr.bf16.mxu0 0
  %186 = vmatpush1.bf16.msra.mxu0 %v145
  %187 = vmatprep.subr.bf16.mxu0 0
  %188 = vmatpush1.bf16.msra.mxu0 %v146
  %189 = vmatprep.subr.bf16.mxu0 0
  %190 = vmatpush1.bf16.msra.mxu0 %v147
  %191 = vmatprep.subr.bf16.mxu0 0
  %192 = vmatpush1.bf16.msra.mxu0 0
  %193 = vmatprep.subr.bf16.mxu0 0
  %194 = vmatpush1.bf16.msra.mxu0 0
  %195 = vmatprep.subr.bf16.mxu0 0
  %196 = vmatpush1.bf16.msra.mxu0 0
  %197 = vmatprep.subr.bf16.mxu0 0
  %198 = vmatpush1.bf16.msra.mxu0 0
  %199 = vmatprep.subr.bf16.mxu0 0
  %200 = vmatpush1.bf16.msra.mxu0 0
  %201 = vmatprep.subr.bf16.mxu0 0
  %202 = vmatpush1.bf16.msra.mxu0 0
  %203 = vmatprep.subr.bf16.mxu0 0
  %204 = vmatpush1.bf16.msra.mxu0 0
  %205 = vmatprep.subr.bf16.mxu0 0
  %206 = vmatpush1.bf16.msra.mxu0 0
  %207 = vmatprep.subr.bf16.mxu0 0
  %208 = vmatpush1.bf16.msra.mxu0 0
  %209 = vmatprep.subr.bf16.mxu0 0
  %210 = vmatpush1.bf16.msra.mxu0 0
  %211 = vmatprep.subr.bf16.mxu0 0
  %212 = vmatpush1.bf16.msra.mxu0 0
  %213 = vmatprep.mubr.bf16.mxu0 0
  %214 = vmatmul.mubr.bf16.gmra.mrb[0].mxu0 %v170
  %v215 = vpop.f32.mrb[0].mxu0
  %v216 = vadd.f32 0.0, %v215
  %v217 = vpop.f32.mrb[0].mxu0
  %v218 = vpop.f32.mrb[0].mxu0
  %v219 = vadd.f32 0.0, %v218
  %v220 = vpop.f32.mrb[0].mxu0
  %221 = vmatprep.mubr.bf16.mxu0 0
  %222 = vmatmul.mubr.bf16.gmra.mrb[0].mxu0 %v173
  %v223 = vpop.f32.mrb[0].mxu0
  %v224 = vadd.f32 0.0, %v223
  %v225 = vpop.f32.mrb[0].mxu0
  %v226 = vpop.f32.mrb[0].mxu0
  %v227 = vadd.f32 0.0, %v226
  %v228 = vpop.f32.mrb[0].mxu0
  %229 = vmatprep.mubr.bf16.mxu0 0
  %230 = vmatmul.mubr.bf16.gmra.mrb[0].mxu0 %v176
  %v231 = vpop.f32.mrb[0].mxu0
  %v232 = vadd.f32 0.0, %v231
  %v233 = vpop.f32.mrb[0].mxu0
  %v234 = vpop.f32.mrb[0].mxu0
  %v235 = vadd.f32 0.0, %v234
  %v236 = vpop.f32.mrb[0].mxu0
  %237 = vmatprep.mubr.bf16.mxu0 0
  %238 = vmatmul.mubr.bf16.gmra.mrb[0].mxu0 %v179
  %v239 = vpop.f32.mrb[0].mxu0
  %v240 = vadd.f32 0.0, %v239
  %v241 = vpop.f32.mrb[0].mxu0
  %v242 = vpop.f32.mrb[0].mxu0
  %v243 = vadd.f32 0.0, %v242
  %v244 = vpop.f32.mrb[0].mxu0
  %245 = vdwg.mxu0
  %s246 = scalar_lea.vmem %s0, 80
  %v247 = vld [vmem:[%s246] sm:$0xff]
  %v248 = vld [vmem:[%s246 + $0x8] sm:$0xff]
  %v249 = vld [vmem:[%s246 + $0x10] sm:$0xff]
  %v250 = vld [vmem:[%s246 + $0x18] sm:$0xff]
  %v251 = vld [vmem:[%s246 + $0x20] sm:$0xff]
  %v252 = vld [vmem:[%s246 + $0x28] sm:$0xff]
  %v253 = vld [vmem:[%s246 + $0x30] sm:$0xff]
  %v254 = vld [vmem:[%s246 + $0x38] sm:$0xff]
  %v255 = vld [vmem:[%s246 + $0x40] sm:$0xff]
  %v256 = vld [vmem:[%s246 + $0x48] sm:$0xff]
  %v257 = vpack.c.bf16 %v248, %v247
  %v258 = vpack.c.bf16 %v250, %v249
  %v259 = vpack.c.bf16 %v252, %v251
  %v260 = vpack.c.bf16 %v254, %v253
  %v261 = vpack.c.bf16 %v256, %v255
  %s262 = scalar_lea.vmem %s2, 12
  %v263 = vld [vmem:[%s262] sm:$0xf]
  %v264 = vld [vmem:[%s262 + $0x4] sm:$0xf]
  %v265 = vld [vmem:[%s262 + $0x8] sm:$0x3]
  %v269 = vunpack.c.l.b16 %v263
  %v270 = vunpack.c.l.b16 %v264
  %v271 = vunpack.c.l.b16 %v265
  %v272 = vpack.c.b16 %v270, %v269
  %v273 = vpack.c.b16 %v271, %v271
  %v276 = vsel %vm42, %v257, 0
  %v279 = vsel %vm42, %v258, 0
  %v282 = vsel %vm42, %v259, 0
  %v285 = vsel %vm42, %v260, 0
  %v288 = vsel %vm42, %v261, 0
  %v291 = vsel %vm58, %v273, 0
  %293 = vmatprep.subr.bf16.mxu0 0
  %294 = vmatpush1.bf16.msra.mxu0 %v272
  %295 = vmatprep.subr.bf16.mxu0 0
  %296 = vmatpush1.bf16.msra.mxu0 %v291
  %297 = vmatprep.subr.bf16.mxu0 0
  %298 = vmatpush1.bf16.msra.mxu0 0
  %299 = vmatprep.subr.bf16.mxu0 0
  %300 = vmatpush1.bf16.msra.mxu0 0
  %301 = vmatprep.subr.bf16.mxu0 0
  %302 = vmatpush1.bf16.msra.mxu0 0
  %303 = vmatprep.subr.bf16.mxu0 0
  %304 = vmatpush1.bf16.msra.mxu0 0
  %305 = vmatprep.subr.bf16.mxu0 0
  %306 = vmatpush1.bf16.msra.mxu0 0
  %307 = vmatprep.subr.bf16.mxu0 0
  %308 = vmatpush1.bf16.msra.mxu0 0
  %309 = vmatprep.subr.bf16.mxu0 0
  %310 = vmatpush1.bf16.msra.mxu0 0
  %311 = vmatprep.subr.bf16.mxu0 0
  %312 = vmatpush1.bf16.msra.mxu0 0
  %313 = vmatprep.subr.bf16.mxu0 0
  %314 = vmatpush1.bf16.msra.mxu0 0
  %315 = vmatprep.subr.bf16.mxu0 0
  %316 = vmatpush1.bf16.msra.mxu0 0
  %317 = vmatprep.subr.bf16.mxu0 0
  %318 = vmatpush1.bf16.msra.mxu0 0
  %319 = vmatprep.subr.bf16.mxu0 0
  %320 = vmatpush1.bf16.msra.mxu0 0
  %321 = vmatprep.subr.bf16.mxu0 0
  %322 = vmatpush1.bf16.msra.mxu0 0
  %323 = vmatprep.subr.bf16.mxu0 0
  %324 = vmatpush1.bf16.msra.mxu0 0
  %325 = vmatprep.mubr.bf16.mxu0 0
  %326 = vmatmul.mubr.bf16.gmra.mrb[0].mxu0 %v276
  %v327 = vpop.f32.mrb[0].mxu0
  %v328 = vadd.f32 0.0, %v327
  %v329 = vpop.f32.mrb[0].mxu0
  %v330 = vpop.f32.mrb[0].mxu0
  %v331 = vadd.f32 0.0, %v330
  %v332 = vpop.f32.mrb[0].mxu0
  %333 = vmatprep.mubr.bf16.mxu0 0
  %334 = vmatmul.mubr.bf16.gmra.mrb[0].mxu0 %v279
  %v335 = vpop.f32.mrb[0].mxu0
  %v336 = vadd.f32 0.0, %v335
  %v337 = vpop.f32.mrb[0].mxu0
  %v338 = vpop.f32.mrb[0].mxu0
  %v339 = vadd.f32 0.0, %v338
  %v340 = vpop.f32.mrb[0].mxu0
  %341 = vmatprep.mubr.bf16.mxu0 0
  %342 = vmatmul.mubr.bf16.gmra.mrb[0].mxu0 %v282
  %v343 = vpop.f32.mrb[0].mxu0
  %v344 = vadd.f32 0.0, %v343
  %v345 = vpop.f32.mrb[0].mxu0
  %v346 = vpop.f32.mrb[0].mxu0
  %v347 = vadd.f32 0.0, %v346
  %v348 = vpop.f32.mrb[0].mxu0
  %349 = vmatprep.mubr.bf16.mxu0 0
  %350 = vmatmul.mubr.bf16.gmra.mrb[0].mxu0 %v285
  %v351 = vpop.f32.mrb[0].mxu0
  %v352 = vadd.f32 0.0, %v351
  %v353 = vpop.f32.mrb[0].mxu0
  %v354 = vpop.f32.mrb[0].mxu0
  %v355 = vadd.f32 0.0, %v354
  %v356 = vpop.f32.mrb[0].mxu0
  %357 = vmatprep.mubr.bf16.mxu0 0
  %358 = vmatmul.mubr.bf16.gmra.mrb[0].mxu0 %v288
  %v359 = vpop.f32.mrb[0].mxu0
  %v360 = vadd.f32 0.0, %v359
  %v361 = vpop.f32.mrb[0].mxu0
  %v362 = vpop.f32.mrb[0].mxu0
  %v363 = vadd.f32 0.0, %v362
  %v364 = vpop.f32.mrb[0].mxu0
  %365 = vdwg.mxu0
  %s366 = scalar_lea.vmem %s1, 32
  %v367 = vld [vmem:[%s366] sm:$0xf]
  %v368 = vld [vmem:[%s366 + $0x4] sm:$0xf]
  %v369 = vld [vmem:[%s366 + $0x8] sm:$0xf]
  %v370 = vld [vmem:[%s366 + $0xc] sm:$0xf]
  %v371 = vld [vmem:[%s366 + $0x10] sm:$0xf]
  %v372 = vld [vmem:[%s366 + $0x14] sm:$0xf]
  %v373 = vld [vmem:[%s366 + $0x18] sm:$0xf]
  %v374 = vld [vmem:[%s366 + $0x1c] sm:$0xf]
  %v375 = vpack.c.bf16 %v331, %v328
  %v376 = vpack.c.bf16 %v339, %v336
  %v377 = vpack.c.bf16 %v347, %v344
  %v378 = vpack.c.bf16 %v355, %v352
  %v379 = vpack.c.bf16 %v363, %v360
  %v388 = vunpack.c.l.b16 %v367
  %v389 = vunpack.c.l.b16 %v368
  %v390 = vunpack.c.l.b16 %v369
  %v391 = vunpack.c.l.b16 %v370
  %v392 = vunpack.c.l.b16 %v371
  %v393 = vunpack.c.l.b16 %v372
  %v394 = vunpack.c.l.b16 %v373
  %v395 = vunpack.c.l.b16 %v374
  %v396 = vpack.c.b16 %v389, %v388
  %v397 = vpack.c.b16 %v391, %v390
  %v398 = vpack.c.b16 %v393, %v392
  %v399 = vpack.c.b16 %v395, %v394
  %v401 = vsel %vm168, %v396, 0
  %v404 = vsel %vm168, %v397, 0
  %v407 = vsel %vm168, %v398, 0
  %v410 = vsel %vm168, %v399, 0
  %412 = vmatprep.subr.bf16.mxu0 0
  %413 = vmatpush1.bf16.msra.mxu0 %v375
  %414 = vmatprep.subr.bf16.mxu0 0
  %415 = vmatpush1.bf16.msra.mxu0 %v376
  %416 = vmatprep.subr.bf16.mxu0 0
  %417 = vmatpush1.bf16.msra.mxu0 %v377
  %418 = vmatprep.subr.bf16.mxu0 0
  %419 = vmatpush1.bf16.msra.mxu0 %v378
  %420 = vmatprep.subr.bf16.mxu0 0
  %421 = vmatpush1.bf16.msra.mxu0 %v379
  %422 = vmatprep.subr.bf16.mxu0 0
  %423 = vmatpush1.bf16.msra.mxu0 0
  %424 = vmatprep.subr.bf16.mxu0 0
  %425 = vmatpush1.bf16.msra.mxu0 0
  %426 = vmatprep.subr.bf16.mxu0 0
  %427 = vmatpush1.bf16.msra.mxu0 0
  %428 = vmatprep.subr.bf16.mxu0 0
  %429 = vmatpush1.bf16.msra.mxu0 0
  %430 = vmatprep.subr.bf16.mxu0 0
  %431 = vmatpush1.bf16.msra.mxu0 0
  %432 = vmatprep.subr.bf16.mxu0 0
  %433 = vmatpush1.bf16.msra.mxu0 0
  %434 = vmatprep.subr.bf16.mxu0 0
  %435 = vmatpush1.bf16.msra.mxu0 0
  %436 = vmatprep.subr.bf16.mxu0 0
  %437 = vmatpush1.bf16.msra.mxu0 0
  %438 = vmatprep.subr.bf16.mxu0 0
  %439 = vmatpush1.bf16.msra.mxu0 0
  %440 = vmatprep.subr.bf16.mxu0 0
  %441 = vmatpush1.bf16.msra.mxu0 0
  %442 = vmatprep.subr.bf16.mxu0 0
  %443 = vmatpush1.bf16.msra.mxu0 0
  %444 = vmatprep.mubr.bf16.mxu0 0
  %445 = vmatmul.mubr.bf16.gmra.mrb[0].mxu0 %v401
  %v446 = vpop.f32.mrb[0].mxu0
  %v447 = vadd.f32 0.0, %v446
  %v448 = vpop.f32.mrb[0].mxu0
  %v449 = vpop.f32.mrb[0].mxu0
  %v450 = vadd.f32 0.0, %v449
  %v451 = vpop.f32.mrb[0].mxu0
  %452 = vmatprep.mubr.bf16.mxu0 0
  %453 = vmatmul.mubr.bf16.gmra.mrb[0].mxu0 %v404
  %v454 = vpop.f32.mrb[0].mxu0
  %v455 = vadd.f32 0.0, %v454
  %v456 = vpop.f32.mrb[0].mxu0
  %v457 = vpop.f32.mrb[0].mxu0
  %v458 = vadd.f32 0.0, %v457
  %v459 = vpop.f32.mrb[0].mxu0
  %460 = vmatprep.mubr.bf16.mxu0 0
  %461 = vmatmul.mubr.bf16.gmra.mrb[0].mxu0 %v407
  %v462 = vpop.f32.mrb[0].mxu0
  %v463 = vadd.f32 0.0, %v462
  %v464 = vpop.f32.mrb[0].mxu0
  %v465 = vpop.f32.mrb[0].mxu0
  %v466 = vadd.f32 0.0, %v465
  %v467 = vpop.f32.mrb[0].mxu0
  %468 = vmatprep.mubr.bf16.mxu0 0
  %469 = vmatmul.mubr.bf16.gmra.mrb[0].mxu0 %v410
  %v470 = vpop.f32.mrb[0].mxu0
  %v471 = vadd.f32 0.0, %v470
  %v472 = vpop.f32.mrb[0].mxu0
  %v473 = vpop.f32.mrb[0].mxu0
  %v474 = vadd.f32 0.0, %v473
  %v475 = vpop.f32.mrb[0].mxu0
  %476 = vdwg.mxu0
  %485 = vrot.lane.b32.xlu0 %v447, 16
  %v486 = vpop.permute.xlu0 %485
  %487 = vrot.lane.b32.xlu0 %v450, 16
  %v488 = vpop.permute.xlu0 %487
  %489 = vrot.lane.b32.xlu0 %v455, 16
  %v490 = vpop.permute.xlu0 %489
  %491 = vrot.lane.b32.xlu0 %v458, 16
  %v492 = vpop.permute.xlu0 %491
  %493 = vrot.lane.b32.xlu0 %v463, 16
  %v494 = vpop.permute.xlu0 %493
  %495 = vrot.lane.b32.xlu0 %v466, 16
  %v496 = vpop.permute.xlu0 %495
  %497 = vrot.lane.b32.xlu0 %v471, 16
  %v498 = vpop.permute.xlu0 %497
  %499 = vrot.lane.b32.xlu0 %v474, 16
  %v500 = vpop.permute.xlu0 %499
  %vm509 = vcmask 130048
  %v510 = vsel %vm509, %v216, %v486
  %v511 = vsel %vm509, %v219, %v488
  %v512 = vsel %vm509, %v224, %v490
  %v513 = vsel %vm509, %v227, %v492
  %v514 = vsel %vm509, %v232, %v494
  %v515 = vsel %vm509, %v235, %v496
  %v516 = vsel %vm509, %v240, %v498
  %v517 = vsel %vm509, %v243, %v500
  %vm518 = vcmask 261120
  %519 = vst.msk [vmem:[%s3] sm:$0xff] %vm518, %v510
  %520 = vst.msk [vmem:[%s3 + $0x8] sm:$0xff] %vm518, %v511
  %521 = vst.msk [vmem:[%s3 + $0x10] sm:$0xff] %vm518, %v512
  %522 = vst.msk [vmem:[%s3 + $0x18] sm:$0xff] %vm518, %v513
  %523 = vst.msk [vmem:[%s3 + $0x20] sm:$0xff] %vm518, %v514
  %524 = vst.msk [vmem:[%s3 + $0x28] sm:$0xff] %vm518, %v515
  %525 = vst.msk [vmem:[%s3 + $0x30] sm:$0xff] %vm518, %v516
  %526 = vst.msk [vmem:[%s3 + $0x38] sm:$0xff] %vm518, %v517
  // Predicated region
  $region14: #{tpu_custom_call.1} parent=0 // pred_check
    _
  $region15: #{tpu_custom_call.1} parent=0 // pred_check_branch
    %528 = sbr.rel (0) target = $region17
  $region16: #{tpu_custom_call.1} parent=0 // pred_region
    _
  $region17: #{tpu_custom_call.1} parent=0 // pred_fallthru
    _
  // Predicated region
  $region18: #{tpu_custom_call.1} parent=0 // pred_check
    _
  $region19: #{tpu_custom_call.1} parent=0 // pred_check_branch
    %530 = sbr.rel (0) target = $region21
  $region20: #{tpu_custom_call.1} parent=0 // pred_region
    _
  $region21: #{tpu_custom_call.1} parent=0 // pred_fallthru
    _

</llo_original>
